<compile_context>
chip_gen: v6e
topology: v6e:2x2x1
jax: 0.10.0
libtpu: 0.0.40
codegen_flags: <defaults>
</compile_context>

<pallas_src>
import functools

import jax
import jax.numpy as jnp
from jax import lax
from jax.experimental import pallas as pl
from jax.experimental.pallas import tpu as pltpu


def _cross_entropy_partial_kernel(x_ref, y_ref, out_ref, *, n_total, tile_n, mask_rows):
    """One row-tile of cross entropy; writes this block's partial loss sum.

    x_ref:   (tile_n, C) logits (native dtype) in VMEM
    y_ref:   (tile_n, 1) int32 targets in VMEM
    out_ref: (1, 8, 128) f32 lane-dense partial-sum tile (value broadcast)
    """
    x = x_ref[...].astype(jnp.float32)        # single convert pass, hidden under DMA
    y = y_ref[...]                            # (tile_n, 1) int32

    # Row-wise logsumexp; everything stays (tile_n, 1) to avoid lane<->sublane
    # relayouts (only the unavoidable XLU row-reductions).
    m = jnp.max(x, axis=-1, keepdims=True)                       # (tile_n, 1)
    s = jnp.sum(jnp.exp(x - m), axis=-1, keepdims=True)          # EUP exp + XLU sum
    lse = m + jnp.log(s)                                         # (tile_n, 1)

    # Target logit via one-hot compare + masked row-sum (VPU select, no gather).
    cols = lax.broadcasted_iota(jnp.int32, x.shape, 1)
    picked = jnp.sum(jnp.where(cols == y, x, 0.0), axis=-1, keepdims=True)

    per_sample = lse - picked                                    # (tile_n, 1)

    if mask_rows:
        # Last block may overrun N: zero the padded rows. jnp.where selects
        # element-wise, so NaN/inf garbage in padded rows cannot leak through.
        row_ids = (pl.program_id(0) * tile_n
                   + lax.broadcasted_iota(jnp.int32, (tile_n, 1), 0))
        per_sample = jnp.where(row_ids < n_total, per_sample, 0.0)

    partial = jnp.sum(per_sample)             # this block's contribution to sum(loss)
    # Unmasked, lane-dense store (full 128-lane width) of the broadcast scalar.
    out_ref[...] = jnp.full(out_ref.shape, partial, dtype=jnp.float32)


def loss_cls(x, y, *, tile_n=None):
    """Mean cross-entropy loss. x: (N, C) float logits (any float dtype),
    y: (N,) integer class ids. Matches torch.nn.functional.cross_entropy(x, y)."""
    n, c = x.shape
    y2d = y.astype(jnp.int32).reshape(n, 1)
    itemsize = jnp.dtype(x.dtype).itemsize

    # Per-row VMEM cost of the double-buffered operands:
    #   x row:  C * itemsize bytes
    #   y row:  (tile_n, 1) int32 lane-pads to 128 lanes -> 128 * 4 = 512 bytes
    x_row_bytes = c * itemsize
    y_row_bytes = 128 * 4

    if tile_n is None:
        # Keep 2 * (x_tile + y_tile) ~<= 20 MiB: comfortably under the 32 MiB
        # scoped-VMEM default on v5e/v6e and v7x (64 MiB physical).
        budget = 20 * 1024 * 1024
        try:
            vmem_bytes = pltpu.get_tpu_info().vmem_capacity_bytes
            budget = min(budget, vmem_bytes // 3)
        except Exception:
            pass
        tile_n = budget // (2 * (x_row_bytes + y_row_bytes))
        tile_n = max(8, (tile_n // 8) * 8)

    if n < 8:
        tile_n = n                                   # block == full row dim
    else:
        cap = n if n % 8 == 0 else (n // 8) * 8      # keep tile a multiple of 8, <= N
        tile_n = max(8, (min(tile_n, cap) // 8) * 8)

    num_tiles = pl.cdiv(n, tile_n)
    mask_rows = (n % tile_n) != 0

    kernel = functools.partial(
        _cross_entropy_partial_kernel,
        n_total=n, tile_n=tile_n, mask_rows=mask_rows)

    partials = pl.pallas_call(
        kernel,
        out_shape=jax.ShapeDtypeStruct((num_tiles, 8, 128), jnp.float32),
        grid=(num_tiles,),
        in_specs=[
            pl.BlockSpec((tile_n, c), lambda i: (i, 0)),   # logits tile (native dtype)
            pl.BlockSpec((tile_n, 1), lambda i: (i, 0)),   # targets tile
        ],
        out_specs=pl.BlockSpec((1, 8, 128), lambda i: (i, 0, 0)),
        compiler_params=pltpu.CompilerParams(
            dimension_semantics=("parallel",)),
        cost_estimate=pl.CostEstimate(
            flops=5 * n * c,
            transcendentals=n * c,
            bytes_accessed=n * c * itemsize + n * 4 + num_tiles * 8 * 128 * 4),
    )(x, y2d)

    # Tiny epilogue: one scalar per row-block, summed, then mean over N.
    return jnp.sum(partials[:, 0, 0]) / n


if __name__ == "__main__":
    key = jax.random.PRNGKey(0)
    kx, ky = jax.random.split(key)

    def ref_ce(x, y):
        xf = x.astype(jnp.float32)
        lse = jax.nn.logsumexp(xf, axis=-1)
        picked = jnp.take_along_axis(xf, y[:, None], axis=-1)[:, 0]
        return jnp.mean(lse - picked)

    # Case 1: small f32 batch (single tile).
    N, C = 8, 32
    x = jax.random.normal(kx, (N, C), dtype=jnp.float32)
    y = jax.random.randint(ky, (N,), 0, C, dtype=jnp.int32)
    loss = loss_cls(x, y)
    jax.block_until_ready(loss)
    assert jnp.allclose(loss, ref_ce(x, y), atol=1e-5, rtol=1e-5), (loss, ref_ce(x, y))

    # Case 2: bf16 logits, forced small tile -> multi-block grid with a padded
    # (masked) last block. Exercises the pipelined / ragged path.
    kx2, ky2 = jax.random.split(ky)
    N2, C2 = 20, 48
    x2 = jax.random.normal(kx2, (N2, C2), dtype=jnp.bfloat16)
    y2 = jax.random.randint(ky2, (N2,), 0, C2, dtype=jnp.int32)
    loss2 = loss_cls(x2, y2, tile_n=8)
    jax.block_until_ready(loss2)
    assert jnp.allclose(loss2, ref_ce(x2, y2), atol=1e-4, rtol=1e-4), (loss2, ref_ce(x2, y2))

    # Case 3: auto tile sizing, N a multiple of 8, non-128-multiple C.
    kx3, ky3 = jax.random.split(ky2)
    N3, C3 = 264, 96
    x3 = jax.random.normal(kx3, (N3, C3), dtype=jnp.float32)
    y3 = jax.random.randint(ky3, (N3,), 0, C3, dtype=jnp.int32)
    loss3 = loss_cls(x3, y3)
    jax.block_until_ready(loss3)
    assert jnp.allclose(loss3, ref_ce(x3, y3), atol=1e-5, rtol=1e-5), (loss3, ref_ce(x3, y3))

    print("KERNEL_OK")
</pallas_src>

<mosaic_0001>
module attributes {stable_mosaic.version = 11 : i64} {
  func.func @_cross_entropy_partial_kernel(%arg0: i32, %arg1: memref<8x32xf32, #tpu.memory_space<vmem>>, %arg2: memref<8x1xi32, #tpu.memory_space<vmem>>, %arg3: memref<1x8x128xf32, #tpu.memory_space<vmem>>) attributes {dimension_semantics = [#tpu.dimension_semantics<parallel>], iteration_bounds = array<i64: 1>, scalar_prefetch = 0 : i64, scratch_operands = 0 : i64, tpu.core_type = #tpu.core_type<tc>, window_params = [{transform_indices = @transform_0, window_bounds = array<i64: 8, 32>}, {transform_indices = @transform_1, window_bounds = array<i64: 8, 1>}, {transform_indices = @transform_2, window_bounds = array<i64: 1, 8, 128>}]} {
    %c0 = arith.constant 0 : index
    %c0_0 = arith.constant 0 : index
    %0 = vector.load %arg1[%c0, %c0_0] : memref<8x32xf32, #tpu.memory_space<vmem>>, vector<8x32xf32>
    %c0_1 = arith.constant 0 : index
    %c0_2 = arith.constant 0 : index
    %1 = vector.load %arg2[%c0_1, %c0_2] : memref<8x1xi32, #tpu.memory_space<vmem>>, vector<8x1xi32>
    %cst = arith.constant dense<0xFF800000> : vector<8xf32>
    %2 = vector.multi_reduction <maximumf>, %0, %cst [1] : vector<8x32xf32> to vector<8xf32>
    %3 = vector.shape_cast %2 : vector<8xf32> to vector<8x1xf32>
    %4 = vector.broadcast %3 : vector<8x1xf32> to vector<8x32xf32>
    %5 = arith.subf %0, %4 : vector<8x32xf32>
    %6 = math.exp %5 : vector<8x32xf32>
    %cst_3 = arith.constant dense<0.000000e+00> : vector<8xf32>
    %7 = vector.multi_reduction <add>, %6, %cst_3 [1] : vector<8x32xf32> to vector<8xf32>
    %8 = vector.shape_cast %7 : vector<8xf32> to vector<8x1xf32>
    %9 = math.log %8 : vector<8x1xf32>
    %10 = arith.addf %3, %9 : vector<8x1xf32>
    %11 = tpu.iota {dimensions = array<i32: 1>} : vector<8x32xi32>
    %12 = vector.broadcast %1 : vector<8x1xi32> to vector<8x32xi32>
    %13 = arith.cmpi eq, %11, %12 : vector<8x32xi32>
    %cst_4 = arith.constant 0.000000e+00 : f32
    %14 = vector.broadcast %cst_4 : f32 to vector<8x32xf32>
    %15 = arith.select %13, %0, %14 : vector<8x32xi1>, vector<8x32xf32>
    %cst_5 = arith.constant dense<0.000000e+00> : vector<8xf32>
    %16 = vector.multi_reduction <add>, %15, %cst_5 [1] : vector<8x32xf32> to vector<8xf32>
    %17 = vector.shape_cast %16 : vector<8xf32> to vector<8x1xf32>
    %18 = arith.subf %10, %17 : vector<8x1xf32>
    %19 = vector.shape_cast %18 : vector<8x1xf32> to vector<1x8x1xf32>
    %cst_6 = arith.constant dense<0.000000e+00> : vector<1xf32>
    %20 = vector.multi_reduction <add>, %19, %cst_6 [1, 2] : vector<1x8x1xf32> to vector<1xf32>
    %21 = vector.shape_cast %20 : vector<1xf32> to vector<1x1x1xf32>
    %22 = vector.extract %21[0, 0, 0] : f32 from vector<1x1x1xf32>
    %23 = vector.broadcast %22 : f32 to vector<1x8x128xf32>
    %c0_7 = arith.constant 0 : index
    %c0_8 = arith.constant 0 : index
    %c0_9 = arith.constant 0 : index
    %24 = vector.load %arg3[%c0_7, %c0_8, %c0_9] : memref<1x8x128xf32, #tpu.memory_space<vmem>>, vector<1x8x128xf32>
    tpu.vector_store %arg3[%c0_7, %c0_8, %c0_9], %23 {strides = array<i32>} : memref<1x8x128xf32, #tpu.memory_space<vmem>>, vector<1x8x128xf32>,
    return
  }
  func.func @transform_0(%arg0: i32) -> (i32, i32) {
    %c0_i32 = arith.constant 0 : i32
    %c0_i32_0 = arith.constant 0 : i32
    return %arg0, %c0_i32 : i32, i32
  }
  func.func @transform_1(%arg0: i32) -> (i32, i32) {
    %c0_i32 = arith.constant 0 : i32
    %c0_i32_0 = arith.constant 0 : i32
    return %arg0, %c0_i32 : i32, i32
  }
  func.func @transform_2(%arg0: i32) -> (i32, i32, i32) {
    %c0_i32 = arith.constant 0 : i32
    %c0_i32_0 = arith.constant 0 : i32
    %c0_i32_1 = arith.constant 0 : i32
    return %arg0, %c0_i32, %c0_i32_0 : i32, i32, i32
  }
}

</mosaic_0001>

<llo_original>
// kernel: tpu_custom_call.1
$region0: #{tpu_custom_call.1}
  #allocation0 [shape = 'u32[]', space=smem, size = 0x4, offset = 0x4, fixed_abs, tag = 'smem constant byte address 0x4 - core index']
  #allocation1 [shape = 'u32[144,128]{1,0:T(1,128)}', space=vmem, size = 0x12000, scoped, tag = 'internal scratch']
  %s0 = inlined_call_operand.vmem [shape: f32[8,32], index: 0, kind: input, shape index: {}]
  %s1 = inlined_call_operand.vmem [shape: s32[8,1], index: 1, kind: input, shape index: {}]
  %s2 = inlined_call_operand.hbm [shape: f32[1,8,128], index: 2, kind: output, shape index: {}]
  %s3 = sld [smem:[#allocation0]]
  $region18: #{tpu_custom_call.1} parent=0
    _
  %s5 = ssub.s32 1, %s3
  %s6 = scalar_select 0, %s5, %s3
  $region1: #{tpu_custom_call.1} parent=0
    #allocation2 [shape = 'u8[4096]{0}', space=vmem, size = 0x1000, scoped, tag = 'output window, operand 0, single buffered']
    #allocation3 [shape = 's32[1]{0}', space=sflag, size = 0x4, scoped, tag = 'scoped memory for tpu_custom_call.1']
    %7 = vsyncpa [#allocation3], 0
    // Predicated region
    $region2: #{tpu_custom_call.1} parent=1 // pred_check
      _
    $region3: #{tpu_custom_call.1} parent=1 // pred_check_branch
      %9 = sbr.rel (0) target = $region5
    $region4: #{tpu_custom_call.1} parent=1 // pred_region
      _
    $region5: #{tpu_custom_call.1} parent=1 // pred_fallthru
      _
    // Predicated region
    $region6: #{tpu_custom_call.1} parent=1 // pred_check
      _
    $region7: #{tpu_custom_call.1} parent=1 // pred_check_branch
      %11 = sbr.rel (0) target = $region9
    $region8: #{tpu_custom_call.1} parent=1 // pred_region
      _
    $region9: #{tpu_custom_call.1} parent=1 // pred_fallthru
      _
    %v12 = vld [vmem:[%s0] sm:$0xff]
    %v13 = vld [vmem:[%s1] sm:$0xff]
    %vm14 = vcmask 261120
    %v15 = vsel %vm14, %v12, -inf
    %16 = vmax.xlane.f32.xlu0 %v15
    %v17 = vpop.xlane.xlu0 %16
    %v18 = vsub.f32 %v12, %v17
    %v19 = vmul.f32 %v18, 1.442695
    %v20 = vpow.pop %v19
    %v21 = vsel %vm14, %v20, 0.0
    %22 = vadd.xlane.f32.xlu0 %v21
    %v23 = vpop.xlane.xlu0 %22
    %v24 = vlog2.pop %v23
    %v25 = vmul.f32 %v24, 0.6931472
    %v26 = vadd.f32 %v17, %v25
    %v27 = vlaneseq
    %v28 = vand.u32 %v27, 127
    %29 = vset.pattern.permute.xlu0 0
    %30 = vperm.xlu0 %29, %v13
    %v31 = vpop.permute.xlu0 %30
    %vm32 = vcmp.eq.s32.totalorder %v28, %v31
    %v33 = vsel %vm32, %v12, 0.0
    %v34 = vsel %vm14, %v33, 0.0
    %35 = vadd.xlane.f32.xlu0 %v34
    %v36 = vpop.xlane.xlu0 %35
    %v37 = vsub.f32 %v26, %v36
    %vm38 = vcmask 7168
    %v39 = vsel %vm38, %v37, 0.0
    %40 = vadd.xlane.f32.xlu0 %v39
    %v41 = vpop.xlane.xlu0 %40
    %v42 = vrot.slane %v41, 4
    %v43 = vadd.f32 %v41, %v42
    %v44 = vrot.slane %v43, 2
    %v45 = vadd.f32 %v43, %v44
    %v46 = vrot.slane %v45, 1
    %v47 = vadd.f32 %v45, %v46
    %s48 = vtos %v47
    %v49 = vstv %s48
    %50 = vst [vmem:[#allocation2] sm:$0xff] %v49
    // Predicated region
    $region10: #{tpu_custom_call.1} parent=1 // pred_check
      _
    $region11: #{tpu_custom_call.1} parent=1 // pred_check_branch
      %52 = sbr.rel (0) target = $region13
    $region12: #{tpu_custom_call.1} parent=1 // pred_region
      %s54 = ssub.s32 128, 128
      %55 = vsyncadd [#allocation3], %s54
      %s57 = sshll.u32 [#allocation2], 4
      %s58 = int_to_ptr.vmem [resolvable:$true] %s57
      %60 = dma.vmem_to_hbm [thread:$0]  %s58, 128, %s2, [#allocation3]
    $region13: #{tpu_custom_call.1} parent=1 // pred_fallthru
      _
    // Predicated region
    $region14: #{tpu_custom_call.1} parent=1 // pred_check
      _
    $region15: #{tpu_custom_call.1} parent=1 // pred_check_branch
      %62 = sbr.rel (0) target = $region17
    $region16: #{tpu_custom_call.1} parent=1 // pred_region
      %63 = dma.done [#allocation3], 128
    $region17: #{tpu_custom_call.1} parent=1 // pred_fallthru
      _
    %64 = vsyncpa [#allocation3], 1

</llo_original>
